<compile_context>
chip_gen: v7x
topology: tpu7x:2x2x1
jax: 0.10.0
libtpu: 0.0.40
codegen_flags: <defaults>
</compile_context>

<pallas_src>
import functools

import jax
import jax.numpy as jnp
from jax.experimental import pallas as pl
from jax.experimental.pallas import tpu as pltpu


def spiral_dnn_kernel(x0_ref, x1_ref, w1a_ref, w1b_ref, b1_ref,
                      w2t_ref, b2_ref, w3_ref, b3_ref, o_ref):
    # Layer 1: in_features = 2 -> two VPU broadcast FMAs (MXU would be ~1% utilized).
    # x0/x1 arrive as (1, TM) feature rows; no sublane extract needed.
    h1 = (w1a_ref[...] * x0_ref[...]
          + w1b_ref[...] * x1_ref[...]
          + b1_ref[...])                                    # (H, TM)
    h1 = jnp.maximum(h1, 0.0)

    # Layer 2: (H, H) @ (H, TM) on the MXU; f32 accumulation; output is TM lanes
    # wide (lane-dense).  If w2t was passed as bf16 (large-H path), h1 is cast to
    # match; at H=32 both stay f32.
    lhs = w2t_ref[...]
    h2 = jnp.dot(lhs, h1.astype(lhs.dtype),
                 preferred_element_type=jnp.float32) + b2_ref[...]
    h2 = jnp.maximum(h2, 0.0)                               # (H, TM)

    # Layer 3: out_features = 1 -> VPU multiply + cross-sublane reduce; scalar
    # bias from 1-D SMEM.  (Moving this to the MXU is neutral unless a bundle
    # dump shows VALU/XLU saturated.)
    logits = jnp.sum(w3_ref[...] * h2, axis=0, keepdims=True) + b3_ref[0]
    o_ref[...] = jax.nn.sigmoid(logits)                     # (1, TM) lane-dense store


def _pick_tile(n):
    """Batch tile so the grid has a small, even number of steps.

    Two steps by default: on v7x the "parallel" batch axis then shards one tile
    per TensorCore; on v5e/v6e (single TC) the extra step is only one ~0.35 us
    pipeline iteration.  Tiles are capped at 8192 and rounded up to the 128-wide
    lane axis.
    """
    LANE, MAX_TILE = 128, 8192
    steps = 2
    while -(-n // steps) > MAX_TILE:
        steps += 2
    per_step = -(-n // steps)
    tile = -(-per_step // LANE) * LANE
    return max(tile, LANE)


@functools.partial(jax.jit, static_argnames=("tile_m",))
def spiral_dnn_forward(x, params, *, tile_m=None):
    """x: (N, 2) f32. params: w1(2,H), b1(1,H), w2(H,H), b2(1,H), w3(H,1), b3(1,1)."""
    n = x.shape[0]
    h = params["w1"].shape[1]
    if tile_m is None:
        tile_m = _pick_tile(n)

    n_pad = pl.cdiv(n, tile_m) * tile_m
    x_pad = jnp.pad(x.astype(jnp.float32), ((0, n_pad - n), (0, 0)))

    # Feature-major split: batch along the lane axis, one (1, n_pad) row per
    # input feature (avoids an in-kernel sublane extract + XLU broadcast).
    # TODO(synk): accept x already feature-major (2, N) from the producer to drop
    # these small wrapper-side copies when this sits in a hot loop.
    x0 = x_pad[:, 0].reshape(1, n_pad)
    x1 = x_pad[:, 1].reshape(1, n_pad)

    # One-time host-side re-layout of the weights (cheap XLA ops, outside the kernel).
    w1a = params["w1"][0].reshape(h, 1)                     # column for x[:, 0]
    w1b = params["w1"][1].reshape(h, 1)                     # column for x[:, 1]
    b1t = params["b1"].reshape(h, 1)
    w2t = params["w2"].T                                    # (H_out, H_in)
    if h >= 256:
        # bf16 MXU operands (~3x layer-2 throughput) only once H can load the MXU;
        # at small H it is not the binding slot and would break 1e-5 tolerance.
        w2t = w2t.astype(jnp.bfloat16)
    b2t = params["b2"].reshape(h, 1)
    w3c = params["w3"].reshape(h, 1)
    b3s = params["b3"].reshape(1)                           # 1-D SMEM scalar

    resident = lambda shp: pl.BlockSpec(shp, lambda i: tuple(0 for _ in shp))

    out = pl.pallas_call(
        spiral_dnn_kernel,
        out_shape=jax.ShapeDtypeStruct((1, n_pad), jnp.float32),
        grid=(n_pad // tile_m,),
        in_specs=[
            pl.BlockSpec((1, tile_m), lambda i: (0, i)),        # x feature 0 (pipelined)
            pl.BlockSpec((1, tile_m), lambda i: (0, i)),        # x feature 1 (pipelined)
            resident((h, 1)),                                   # w1 col 0 (resident)
            resident((h, 1)),                                   # w1 col 1
            resident((h, 1)),                                   # b1
            resident((h, h)),                                   # w2^T
            resident((h, 1)),                                   # b2
            resident((h, 1)),                                   # w3
            pl.BlockSpec(memory_space=pltpu.MemorySpace.SMEM),  # b3 scalar (1-D)
        ],
        out_specs=pl.BlockSpec((1, tile_m), lambda i: (0, i)),  # lane-dense output
        compiler_params=pltpu.CompilerParams(
            dimension_semantics=("parallel",)),
    )(x0, x1, w1a, w1b, b1t, w2t, b2t, w3c, b3s)

    return out[0, :n].reshape(n, 1)


def init_params(key, hid_dim):
    """Deterministic init mimicking nn.Linear default (uniform +-1/sqrt(fan_in))."""
    ks = jax.random.split(key, 6)

    def linear(kw, kb, fan_in, fan_out):
        bound = 1.0 / jnp.sqrt(fan_in)
        w = jax.random.uniform(kw, (fan_in, fan_out), jnp.float32, -bound, bound)
        b = jax.random.uniform(kb, (1, fan_out), jnp.float32, -bound, bound)
        return w, b

    w1, b1 = linear(ks[0], ks[1], 2, hid_dim)
    w2, b2 = linear(ks[2], ks[3], hid_dim, hid_dim)
    w3, b3 = linear(ks[4], ks[5], hid_dim, 1)
    return {"w1": w1, "b1": b1, "w2": w2, "b2": b2, "w3": w3, "b3": b3}


if __name__ == "__main__":
    key = jax.random.PRNGKey(0)
    k_x, k_p = jax.random.split(key)

    hid_dim = 32
    batch = 1000          # pads to 1024 -> 2 grid steps of 512 (one per v7x TC)
    x = jax.random.normal(k_x, (batch, 2), dtype=jnp.float32)
    params = init_params(k_p, hid_dim)

    out = spiral_dnn_forward(x, params)
    out = jax.block_until_ready(out)

    # Reference check in plain JAX (same math as torch.sigmoid(net(x))).
    h1 = jnp.maximum(x @ params["w1"] + params["b1"], 0.0)
    h2 = jnp.maximum(h1 @ params["w2"] + params["b2"], 0.0)
    ref = jax.nn.sigmoid(h2 @ params["w3"] + params["b3"])

    assert out.shape == (batch, 1)
    assert jnp.allclose(out, ref, atol=1e-5, rtol=1e-5), "mismatch vs reference"

    print("KERNEL_OK")
</pallas_src>

<mosaic_0001>
module attributes {stable_mosaic.version = 11 : i64} {
  func.func @spiral_dnn_kernel(%arg0: i32, %arg1: memref<1x512xf32, #tpu.memory_space<vmem>>, %arg2: memref<1x512xf32, #tpu.memory_space<vmem>>, %arg3: memref<32x1xf32, #tpu.memory_space<vmem>>, %arg4: memref<32x1xf32, #tpu.memory_space<vmem>>, %arg5: memref<32x1xf32, #tpu.memory_space<vmem>>, %arg6: memref<32x32xf32, #tpu.memory_space<vmem>>, %arg7: memref<32x1xf32, #tpu.memory_space<vmem>>, %arg8: memref<32x1xf32, #tpu.memory_space<vmem>>, %arg9: memref<1xf32, #tpu.memory_space<smem>>, %arg10: memref<1x512xf32, #tpu.memory_space<vmem>>) attributes {dimension_semantics = [#tpu.dimension_semantics<parallel>], iteration_bounds = array<i64: 2>, scalar_prefetch = 0 : i64, scratch_operands = 0 : i64, tpu.core_type = #tpu.core_type<tc>, window_params = [{transform_indices = @transform_0, window_bounds = array<i64: 1, 512>}, {transform_indices = @transform_1, window_bounds = array<i64: 1, 512>}, {pipeline_mode = #tpu.pipeline_mode<synchronous>, transform_indices = @transform_2, window_bounds = array<i64: 32, 1>}, {pipeline_mode = #tpu.pipeline_mode<synchronous>, transform_indices = @transform_3, window_bounds = array<i64: 32, 1>}, {pipeline_mode = #tpu.pipeline_mode<synchronous>, transform_indices = @transform_4, window_bounds = array<i64: 32, 1>}, {pipeline_mode = #tpu.pipeline_mode<synchronous>, transform_indices = @transform_5, window_bounds = array<i64: 32, 32>}, {pipeline_mode = #tpu.pipeline_mode<synchronous>, transform_indices = @transform_6, window_bounds = array<i64: 32, 1>}, {pipeline_mode = #tpu.pipeline_mode<synchronous>, transform_indices = @transform_7, window_bounds = array<i64: 32, 1>}, {transform_indices = @transform_8, window_bounds = array<i64: 1>}, {transform_indices = @transform_9, window_bounds = array<i64: 1, 512>}]} {
    %c0 = arith.constant 0 : index
    %c0_0 = arith.constant 0 : index
    %0 = vector.load %arg3[%c0, %c0_0] : memref<32x1xf32, #tpu.memory_space<vmem>>, vector<32x1xf32>
    %c0_1 = arith.constant 0 : index
    %c0_2 = arith.constant 0 : index
    %1 = vector.load %arg1[%c0_1, %c0_2] : memref<1x512xf32, #tpu.memory_space<vmem>>, vector<1x512xf32>
    %2 = vector.broadcast %0 : vector<32x1xf32> to vector<32x512xf32>
    %3 = vector.broadcast %1 : vector<1x512xf32> to vector<32x512xf32>
    %4 = arith.mulf %2, %3 : vector<32x512xf32>
    %c0_3 = arith.constant 0 : index
    %c0_4 = arith.constant 0 : index
    %5 = vector.load %arg4[%c0_3, %c0_4] : memref<32x1xf32, #tpu.memory_space<vmem>>, vector<32x1xf32>
    %c0_5 = arith.constant 0 : index
    %c0_6 = arith.constant 0 : index
    %6 = vector.load %arg2[%c0_5, %c0_6] : memref<1x512xf32, #tpu.memory_space<vmem>>, vector<1x512xf32>
    %7 = vector.broadcast %5 : vector<32x1xf32> to vector<32x512xf32>
    %8 = vector.broadcast %6 : vector<1x512xf32> to vector<32x512xf32>
    %9 = arith.mulf %7, %8 : vector<32x512xf32>
    %10 = arith.addf %4, %9 : vector<32x512xf32>
    %c0_7 = arith.constant 0 : index
    %c0_8 = arith.constant 0 : index
    %11 = vector.load %arg5[%c0_7, %c0_8] : memref<32x1xf32, #tpu.memory_space<vmem>>, vector<32x1xf32>
    %12 = vector.broadcast %11 : vector<32x1xf32> to vector<32x512xf32>
    %13 = arith.addf %10, %12 : vector<32x512xf32>
    %cst = arith.constant 0.000000e+00 : f32
    %14 = vector.broadcast %cst : f32 to vector<32x512xf32>
    %15 = arith.maximumf %13, %14 : vector<32x512xf32>
    %c0_9 = arith.constant 0 : index
    %c0_10 = arith.constant 0 : index
    %16 = vector.load %arg6[%c0_9, %c0_10] : memref<32x32xf32, #tpu.memory_space<vmem>>, vector<32x32xf32>
    %cst_11 = arith.constant dense<0.000000e+00> : vector<32x512xf32>
    %17 = tpu.matmul %16, %15, %cst_11 {dimension_numbers = #tpu.dot_dimension_numbers<[1], [0], [0], [1], [0, 0, 1, 1], [], []>} : vector<32x32xf32>, vector<32x512xf32>, vector<32x512xf32> -> vector<32x512xf32>
    %c0_12 = arith.constant 0 : index
    %c0_13 = arith.constant 0 : index
    %18 = vector.load %arg7[%c0_12, %c0_13] : memref<32x1xf32, #tpu.memory_space<vmem>>, vector<32x1xf32>
    %19 = vector.broadcast %18 : vector<32x1xf32> to vector<32x512xf32>
    %20 = arith.addf %17, %19 : vector<32x512xf32>
    %cst_14 = arith.constant 0.000000e+00 : f32
    %21 = vector.broadcast %cst_14 : f32 to vector<32x512xf32>
    %22 = arith.maximumf %20, %21 : vector<32x512xf32>
    %c0_15 = arith.constant 0 : index
    %c0_16 = arith.constant 0 : index
    %23 = vector.load %arg8[%c0_15, %c0_16] : memref<32x1xf32, #tpu.memory_space<vmem>>, vector<32x1xf32>
    %24 = vector.broadcast %23 : vector<32x1xf32> to vector<32x512xf32>
    %25 = arith.mulf %24, %22 : vector<32x512xf32>
    %cst_17 = arith.constant dense<0.000000e+00> : vector<512xf32>
    %26 = vector.multi_reduction <add>, %25, %cst_17 [0] : vector<32x512xf32> to vector<512xf32>
    %27 = vector.shape_cast %26 : vector<512xf32> to vector<1x512xf32>
    %c0_18 = arith.constant 0 : index
    %28 = memref.load %arg9[%c0_18] : memref<1xf32, #tpu.memory_space<smem>>
    %29 = vector.broadcast %28 : f32 to vector<1x512xf32>
    %30 = arith.addf %27, %29 : vector<1x512xf32>
    %31 = arith.negf %30 : vector<1x512xf32>
    %32 = math.exp %31 : vector<1x512xf32>
    %cst_19 = arith.constant 1.000000e+00 : f32
    %33 = vector.broadcast %cst_19 : f32 to vector<1x512xf32>
    %34 = arith.addf %33, %32 : vector<1x512xf32>
    %35 = arith.divf %33, %34 : vector<1x512xf32>
    %c0_20 = arith.constant 0 : index
    %c0_21 = arith.constant 0 : index
    %36 = vector.load %arg10[%c0_20, %c0_21] : memref<1x512xf32, #tpu.memory_space<vmem>>, vector<1x512xf32>
    tpu.vector_store %arg10[%c0_20, %c0_21], %35 {strides = array<i32>} : memref<1x512xf32, #tpu.memory_space<vmem>>, vector<1x512xf32>,
    return
  }
  func.func @transform_0(%arg0: i32) -> (i32, i32) {
    %c0_i32 = arith.constant 0 : i32
    %c0_i32_0 = arith.constant 0 : i32
    return %c0_i32, %arg0 : i32, i32
  }
  func.func @transform_1(%arg0: i32) -> (i32, i32) {
    %c0_i32 = arith.constant 0 : i32
    %c0_i32_0 = arith.constant 0 : i32
    return %c0_i32, %arg0 : i32, i32
  }
  func.func @transform_2(%arg0: i32) -> (i32, i32) {
    %c0_i32 = arith.constant 0 : i32
    %c0_i32_0 = arith.constant 0 : i32
    %c0_i32_1 = arith.constant 0 : i32
    return %c0_i32, %c0_i32_0 : i32, i32
  }
  func.func @transform_3(%arg0: i32) -> (i32, i32) {
    %c0_i32 = arith.constant 0 : i32
    %c0_i32_0 = arith.constant 0 : i32
    %c0_i32_1 = arith.constant 0 : i32
    return %c0_i32, %c0_i32_0 : i32, i32
  }
  func.func @transform_4(%arg0: i32) -> (i32, i32) {
    %c0_i32 = arith.constant 0 : i32
    %c0_i32_0 = arith.constant 0 : i32
    %c0_i32_1 = arith.constant 0 : i32
    return %c0_i32, %c0_i32_0 : i32, i32
  }
  func.func @transform_5(%arg0: i32) -> (i32, i32) {
    %c0_i32 = arith.constant 0 : i32
    %c0_i32_0 = arith.constant 0 : i32
    %c0_i32_1 = arith.constant 0 : i32
    return %c0_i32, %c0_i32_0 : i32, i32
  }
  func.func @transform_6(%arg0: i32) -> (i32, i32) {
    %c0_i32 = arith.constant 0 : i32
    %c0_i32_0 = arith.constant 0 : i32
    %c0_i32_1 = arith.constant 0 : i32
    return %c0_i32, %c0_i32_0 : i32, i32
  }
  func.func @transform_7(%arg0: i32) -> (i32, i32) {
    %c0_i32 = arith.constant 0 : i32
    %c0_i32_0 = arith.constant 0 : i32
    %c0_i32_1 = arith.constant 0 : i32
    return %c0_i32, %c0_i32_0 : i32, i32
  }
  func.func @transform_8(%arg0: i32) -> i32 {
    %c0_i32 = arith.constant 0 : i32
    %c0_i32_0 = arith.constant 0 : i32
    return %c0_i32 : i32
  }
  func.func @transform_9(%arg0: i32) -> (i32, i32) {
    %c0_i32 = arith.constant 0 : i32
    %c0_i32_0 = arith.constant 0 : i32
    return %c0_i32, %arg0 : i32, i32
  }
}

</mosaic_0001>

<llo_original>
// kernel: spiral_dnn_forward.1
$region0: #{spiral_dnn_forward.1}
  #allocation0 [shape = 'u32[]', space=smem, size = 0x4, offset = 0x4, fixed_abs, tag = 'smem constant byte address 0x4 - core index']
  #allocation1 [shape = 'u32[144,128]{1,0:T(1,128)}', space=vmem, size = 0x12000, scoped, tag = 'internal scratch']
  #allocation2 [shape = 'f32[1]{0:T(128)S(6)}', space=smem, size = 0x200, scoped, tag = 'scoped memory for spiral_dnn_forward.1']
  %s0 = inlined_call_operand.vmem [shape: f32[1,1024], index: 0, kind: input, shape index: {}]
  %s1 = inlined_call_operand.vmem [shape: f32[1,1024], index: 1, kind: input, shape index: {}]
  %s2 = inlined_call_operand.vmem [shape: f32[32,1], index: 2, kind: input, shape index: {}]
  %s3 = inlined_call_operand.vmem [shape: f32[32,1], index: 3, kind: input, shape index: {}]
  %s4 = inlined_call_operand.vmem [shape: f32[32,1], index: 4, kind: input, shape index: {}]
  %s5 = inlined_call_operand.vmem [shape: f32[32,32], index: 5, kind: input, shape index: {}]
  %s6 = inlined_call_operand.vmem [shape: f32[32,1], index: 6, kind: input, shape index: {}]
  %s7 = inlined_call_operand.vmem [shape: f32[32,1], index: 7, kind: input, shape index: {}]
  %s8 = inlined_call_operand.<no memory space> [shape: f32[1], index: 8, kind: input, shape index: {}]
  %s9 = inlined_call_operand.vmem [shape: f32[1,1024], index: 9, kind: output, shape index: {}]
  %s10 = sld [smem:[#allocation0]]
  $region69: #{spiral_dnn_forward.1} parent=0
    _
  %s12 = ssub.s32 1, %s10
  %s13 = scalar_select 0, %s12, %s10
  %14 = sst [smem:[#allocation2]] %s8
  loop: start=0, step=1, limit=4
  $region2: #{spiral_dnn_forward.1} parent=0 // loop_pre_header
    _
  $region3: #{spiral_dnn_forward.1} parent=0 // loop_header
    %s16 = sphi 0, %s20
    %p17 = scmp.ge.s32.totalorder %s16, 4
    %s26 = sphi 0, %s28
    %s29 = sphi 0, %s26
    %s30 = sphi 0, %s29
    %s46 = sphi 0, %s30
    %s52 = sphi 0, %s54
    %s55 = sphi 0, %s52
    %s56 = sphi 0, %s55
    %s72 = sphi 0, %s56
    %s76 = sphi 0, %s76
    %s78 = sphi 0, %s76
    %s79 = sphi 0, %s78
    %s93 = sphi 0, %s79
    %s97 = sphi 0, %s97
    %s99 = sphi 0, %s97
    %s100 = sphi 0, %s99
    %s114 = sphi 0, %s100
    %s118 = sphi 0, %s118
    %s120 = sphi 0, %s118
    %s121 = sphi 0, %s120
    %s135 = sphi 0, %s121
    %s139 = sphi 0, %s139
    %s141 = sphi 0, %s139
    %s142 = sphi 0, %s141
    %s156 = sphi 0, %s142
    %s160 = sphi 0, %s160
    %s162 = sphi 0, %s160
    %s163 = sphi 0, %s162
    %s177 = sphi 0, %s163
    %s181 = sphi 0, %s181
    %s183 = sphi 0, %s181
    %s184 = sphi 0, %s183
    %s198 = sphi 0, %s184
    %s202 = sphi 0, %s202
    %s204 = sphi 0, %s202
    %s205 = sphi 0, %s204
    %s219 = sphi 0, %s205
    %s225 = sphi 0, %s227
    %s228 = sphi 0, %s225
    %s229 = sphi 0, %s228
    %s245 = sphi 0, %s229
  $region4: #{spiral_dnn_forward.1} parent=0 // loop_header_branch
    %19 = sbr.rel (%p17) target = $region8
  $region5: #{spiral_dnn_forward.1} parent=0 // loop_body
    %s21 = ssub.s32 %s16, 1
    %s22 = ssub.s32 %s16, 2
    %s23 = sadd.s32 %s16, 1
    %s24 = ssub.s32 %s16, %s23
    %p25 = scmp.eq.s32.totalorder %s24, 0
    %s27 = sadd.s32 %s26, 1
    %s28 = scalar_select %p25, %s26, %s27
    %p31 = pneg %p25
    %p32 = scmp.eq.s32.totalorder %s16, 1
    %p33 = por %p31, %p32
    %p34 = scmp.ne.s32.totalorder %s26, %s29
    %p35 = scmp.eq.s32.totalorder %s16, 0
    %p36 = por %p34, %p35
    %p37 = scmp.ne.s32.totalorder %s26, %s29
    %p38 = scmp.eq.s32.totalorder %s21, 1
    %p39 = por %p37, %p38
    %p40 = scmp.ne.s32.totalorder %s29, %s30
    %p41 = scmp.eq.s32.totalorder %s21, 0
    %p42 = por %p40, %p41
    %p43 = scmp.ne.s32.totalorder %s29, %s30
    %p44 = scmp.eq.s32.totalorder %s22, 1
    %p45 = por %p43, %p44
    %p47 = scmp.ne.s32.totalorder %s30, %s46
    %p48 = scmp.eq.s32.totalorder %s22, 0
    %p49 = por %p47, %p48
    %s50 = ssub.s32 %s16, %s23
    %p51 = scmp.eq.s32.totalorder %s50, 0
    %s53 = sadd.s32 %s52, 1
    %s54 = scalar_select %p51, %s52, %s53
    %p57 = pneg %p51
    %p58 = scmp.eq.s32.totalorder %s16, 1
    %p59 = por %p57, %p58
    %p60 = scmp.ne.s32.totalorder %s52, %s55
    %p61 = scmp.eq.s32.totalorder %s16, 0
    %p62 = por %p60, %p61
    %p63 = scmp.ne.s32.totalorder %s52, %s55
    %p64 = scmp.eq.s32.totalorder %s21, 1
    %p65 = por %p63, %p64
    %p66 = scmp.ne.s32.totalorder %s55, %s56
    %p67 = scmp.eq.s32.totalorder %s21, 0
    %p68 = por %p66, %p67
    %p69 = scmp.ne.s32.totalorder %s55, %s56
    %p70 = scmp.eq.s32.totalorder %s22, 1
    %p71 = por %p69, %p70
    %p73 = scmp.ne.s32.totalorder %s56, %s72
    %p74 = scmp.eq.s32.totalorder %s22, 0
    %p75 = por %p73, %p74
    %s77 = sadd.s32 %s76, 1
    %p80 = scmp.eq.s32.totalorder %s16, 1
    %p81 = scmp.ne.s32.totalorder %s76, %s78
    %p82 = scmp.eq.s32.totalorder %s16, 0
    %p83 = por %p81, %p82
    %p84 = scmp.ne.s32.totalorder %s76, %s78
    %p85 = scmp.eq.s32.totalorder %s21, 1
    %p86 = por %p84, %p85
    %p87 = scmp.ne.s32.totalorder %s78, %s79
    %p88 = scmp.eq.s32.totalorder %s21, 0
    %p89 = por %p87, %p88
    %p90 = scmp.ne.s32.totalorder %s78, %s79
    %p91 = scmp.eq.s32.totalorder %s22, 1
    %p92 = por %p90, %p91
    %p94 = scmp.ne.s32.totalorder %s79, %s93
    %p95 = scmp.eq.s32.totalorder %s22, 0
    %p96 = por %p94, %p95
    %s98 = sadd.s32 %s97, 1
    %p101 = scmp.eq.s32.totalorder %s16, 1
    %p102 = scmp.ne.s32.totalorder %s97, %s99
    %p103 = scmp.eq.s32.totalorder %s16, 0
    %p104 = por %p102, %p103
    %p105 = scmp.ne.s32.totalorder %s97, %s99
    %p106 = scmp.eq.s32.totalorder %s21, 1
    %p107 = por %p105, %p106
    %p108 = scmp.ne.s32.totalorder %s99, %s100
    %p109 = scmp.eq.s32.totalorder %s21, 0
    %p110 = por %p108, %p109
    %p111 = scmp.ne.s32.totalorder %s99, %s100
    %p112 = scmp.eq.s32.totalorder %s22, 1
    %p113 = por %p111, %p112
    %p115 = scmp.ne.s32.totalorder %s100, %s114
    %p116 = scmp.eq.s32.totalorder %s22, 0
    %p117 = por %p115, %p116
    %s119 = sadd.s32 %s118, 1
    %p122 = scmp.eq.s32.totalorder %s16, 1
    %p123 = scmp.ne.s32.totalorder %s118, %s120
    %p124 = scmp.eq.s32.totalorder %s16, 0
    %p125 = por %p123, %p124
    %p126 = scmp.ne.s32.totalorder %s118, %s120
    %p127 = scmp.eq.s32.totalorder %s21, 1
    %p128 = por %p126, %p127
    %p129 = scmp.ne.s32.totalorder %s120, %s121
    %p130 = scmp.eq.s32.totalorder %s21, 0
    %p131 = por %p129, %p130
    %p132 = scmp.ne.s32.totalorder %s120, %s121
    %p133 = scmp.eq.s32.totalorder %s22, 1
    %p134 = por %p132, %p133
    %p136 = scmp.ne.s32.totalorder %s121, %s135
    %p137 = scmp.eq.s32.totalorder %s22, 0
    %p138 = por %p136, %p137
    %s140 = sadd.s32 %s139, 1
    %p143 = scmp.eq.s32.totalorder %s16, 1
    %p144 = scmp.ne.s32.totalorder %s139, %s141
    %p145 = scmp.eq.s32.totalorder %s16, 0
    %p146 = por %p144, %p145
    %p147 = scmp.ne.s32.totalorder %s139, %s141
    %p148 = scmp.eq.s32.totalorder %s21, 1
    %p149 = por %p147, %p148
    %p150 = scmp.ne.s32.totalorder %s141, %s142
    %p151 = scmp.eq.s32.totalorder %s21, 0
    %p152 = por %p150, %p151
    %p153 = scmp.ne.s32.totalorder %s141, %s142
    %p154 = scmp.eq.s32.totalorder %s22, 1
    %p155 = por %p153, %p154
    %p157 = scmp.ne.s32.totalorder %s142, %s156
    %p158 = scmp.eq.s32.totalorder %s22, 0
    %p159 = por %p157, %p158
    %s161 = sadd.s32 %s160, 1
    %p164 = scmp.eq.s32.totalorder %s16, 1
    %p165 = scmp.ne.s32.totalorder %s160, %s162
    %p166 = scmp.eq.s32.totalorder %s16, 0
    %p167 = por %p165, %p166
    %p168 = scmp.ne.s32.totalorder %s160, %s162
    %p169 = scmp.eq.s32.totalorder %s21, 1
    %p170 = por %p168, %p169
    %p171 = scmp.ne.s32.totalorder %s162, %s163
    %p172 = scmp.eq.s32.totalorder %s21, 0
    %p173 = por %p171, %p172
    %p174 = scmp.ne.s32.totalorder %s162, %s163
    %p175 = scmp.eq.s32.totalorder %s22, 1
    %p176 = por %p174, %p175
    %p178 = scmp.ne.s32.totalorder %s163, %s177
    %p179 = scmp.eq.s32.totalorder %s22, 0
    %p180 = por %p178, %p179
    %s182 = sadd.s32 %s181, 1
    %p185 = scmp.eq.s32.totalorder %s16, 1
    %p186 = scmp.ne.s32.totalorder %s181, %s183
    %p187 = scmp.eq.s32.totalorder %s16, 0
    %p188 = por %p186, %p187
    %p189 = scmp.ne.s32.totalorder %s181, %s183
    %p190 = scmp.eq.s32.totalorder %s21, 1
    %p191 = por %p189, %p190
    %p192 = scmp.ne.s32.totalorder %s183, %s184
    %p193 = scmp.eq.s32.totalorder %s21, 0
    %p194 = por %p192, %p193
    %p195 = scmp.ne.s32.totalorder %s183, %s184
    %p196 = scmp.eq.s32.totalorder %s22, 1
    %p197 = por %p195, %p196
    %p199 = scmp.ne.s32.totalorder %s184, %s198
    %p200 = scmp.eq.s32.totalorder %s22, 0
    %p201 = por %p199, %p200
    %s203 = sadd.s32 %s202, 1
    %p206 = scmp.eq.s32.totalorder %s16, 1
    %p207 = scmp.ne.s32.totalorder %s202, %s204
    %p208 = scmp.eq.s32.totalorder %s16, 0
    %p209 = por %p207, %p208
    %p210 = scmp.ne.s32.totalorder %s202, %s204
    %p211 = scmp.eq.s32.totalorder %s21, 1
    %p212 = por %p210, %p211
    %p213 = scmp.ne.s32.totalorder %s204, %s205
    %p214 = scmp.eq.s32.totalorder %s21, 0
    %p215 = por %p213, %p214
    %p216 = scmp.ne.s32.totalorder %s204, %s205
    %p217 = scmp.eq.s32.totalorder %s22, 1
    %p218 = por %p216, %p217
    %p220 = scmp.ne.s32.totalorder %s205, %s219
    %p221 = scmp.eq.s32.totalorder %s22, 0
    %p222 = por %p220, %p221
    %s223 = ssub.s32 %s16, %s23
    %p224 = scmp.eq.s32.totalorder %s223, 0
    %s226 = sadd.s32 %s225, 1
    %s227 = scalar_select %p224, %s225, %s226
    %p230 = pneg %p224
    %p231 = scmp.eq.s32.totalorder %s16, 1
    %p232 = por %p230, %p231
    %p233 = scmp.ne.s32.totalorder %s225, %s228
    %p234 = scmp.eq.s32.totalorder %s16, 0
    %p235 = por %p233, %p234
    %p236 = scmp.ne.s32.totalorder %s225, %s228
    %p237 = scmp.eq.s32.totalorder %s21, 1
    %p238 = por %p236, %p237
    %p239 = scmp.ne.s32.totalorder %s228, %s229
    %p240 = scmp.eq.s32.totalorder %s21, 0
    %p241 = por %p239, %p240
    %p242 = scmp.ne.s32.totalorder %s228, %s229
    %p243 = scmp.eq.s32.totalorder %s22, 1
    %p244 = por %p242, %p243
    %p246 = scmp.ne.s32.totalorder %s229, %s245
    %p247 = scmp.eq.s32.totalorder %s22, 0
    %p248 = por %p246, %p247
    %p249 = scmp.le.s32.totalorder 1, %s16
    %p250 = scmp.lt.s32.totalorder %s16, 3
    %p251 = pnand %p249, %p250
    %p252 = pneg %p251
    // Predicated region
    $region9: #{spiral_dnn_forward.1} parent=5 // pred_check
      _
    $region10: #{spiral_dnn_forward.1} parent=5 // pred_check_branch
      %254 = sbr.rel (%p251) target = $region12
    $region11: #{spiral_dnn_forward.1} parent=5 // pred_region
      %s255 = ssub.s32 %s16, 1
      // Predicated region
      $region13: #{spiral_dnn_forward.1} parent=11 // pred_check
        %p256 = pneg %p89
      $region14: #{spiral_dnn_forward.1} parent=11 // pred_check_branch
        %258 = sbr.rel (%p256) target = $region16
      $region15: #{spiral_dnn_forward.1} parent=11 // pred_region
        _
      $region16: #{spiral_dnn_forward.1} parent=11 // pred_fallthru
        _
      // Predicated region
      $region17: #{spiral_dnn_forward.1} parent=11 // pred_check
        %p259 = pneg %p110
      $region18: #{spiral_dnn_forward.1} parent=11 // pred_check_branch
        %261 = sbr.rel (%p259) target = $region20
      $region19: #{spiral_dnn_forward.1} parent=11 // pred_region
        _
      $region20: #{spiral_dnn_forward.1} parent=11 // pred_fallthru
        _
      // Predicated region
      $region21: #{spiral_dnn_forward.1} parent=11 // pred_check
        %p262 = pneg %p131
      $region22: #{spiral_dnn_forward.1} parent=11 // pred_check_branch
        %264 = sbr.rel (%p262) target = $region24
      $region23: #{spiral_dnn_forward.1} parent=11 // pred_region
        _
      $region24: #{spiral_dnn_forward.1} parent=11 // pred_fallthru
        _
      // Predicated region
      $region25: #{spiral_dnn_forward.1} parent=11 // pred_check
        %p265 = pneg %p152
      $region26: #{spiral_dnn_forward.1} parent=11 // pred_check_branch
        %267 = sbr.rel (%p265) target = $region28
      $region27: #{spiral_dnn_forward.1} parent=11 // pred_region
        _
      $region28: #{spiral_dnn_forward.1} parent=11 // pred_fallthru
        _
      // Predicated region
      $region29: #{spiral_dnn_forward.1} parent=11 // pred_check
        %p268 = pneg %p173
      $region30: #{spiral_dnn_forward.1} parent=11 // pred_check_branch
        %270 = sbr.rel (%p268) target = $region32
      $region31: #{spiral_dnn_forward.1} parent=11 // pred_region
        _
      $region32: #{spiral_dnn_forward.1} parent=11 // pred_fallthru
        _
      // Predicated region
      $region33: #{spiral_dnn_forward.1} parent=11 // pred_check
        %p271 = pneg %p194
      $region34: #{spiral_dnn_forward.1} parent=11 // pred_check_branch
        %273 = sbr.rel (%p271) target = $region36
      $region35: #{spiral_dnn_forward.1} parent=11 // pred_region
        _
      $region36: #{spiral_dnn_forward.1} parent=11 // pred_fallthru
        _
      // Predicated region
      $region37: #{spiral_dnn_forward.1} parent=11 // pred_check
        %p274 = pneg %p215
      $region38: #{spiral_dnn_forward.1} parent=11 // pred_check_branch
        %276 = sbr.rel (%p274) target = $region40
      $region39: #{spiral_dnn_forward.1} parent=11 // pred_region
        _
      $region40: #{spiral_dnn_forward.1} parent=11 // pred_fallthru
        _
    $region12: #{spiral_dnn_forward.1} parent=5 // pred_fallthru
      _
    %p277 = scmp.lt.s32.totalorder %s16, 2
    // Predicated region
    $region41: #{spiral_dnn_forward.1} parent=5 // pred_check
      %p278 = pneg %p277
    $region42: #{spiral_dnn_forward.1} parent=5 // pred_check_branch
      %280 = sbr.rel (%p278) target = $region44
    $region43: #{spiral_dnn_forward.1} parent=5 // pred_region
      // Predicated region
      $region45: #{spiral_dnn_forward.1} parent=43 // pred_check
        %p281 = pneg %p36
      $region46: #{spiral_dnn_forward.1} parent=43 // pred_check_branch
        %283 = sbr.rel (%p281) target = $region48
      $region47: #{spiral_dnn_forward.1} parent=43 // pred_region
        %s284 = smul.u32 4, %s16
        %p285 = scmp.lt.s32.totalorder %s284, 7
        %s286 = scalar_select %p285, %s284, 7
        %s287 = scalar_lea.vmem %s0, %s286
        %s288 = smul.u32 4, %s16
      $region48: #{spiral_dnn_forward.1} parent=43 // pred_fallthru
        _
      // Predicated region
      $region49: #{spiral_dnn_forward.1} parent=43 // pred_check
        %p289 = pneg %p62
      $region50: #{spiral_dnn_forward.1} parent=43 // pred_check_branch
        %291 = sbr.rel (%p289) target = $region52
      $region51: #{spiral_dnn_forward.1} parent=43 // pred_region
        %s292 = smul.u32 4, %s16
        %p293 = scmp.lt.s32.totalorder %s292, 7
        %s294 = scalar_select %p293, %s292, 7
        %s295 = scalar_lea.vmem %s1, %s294
        %s296 = smul.u32 4, %s16
      $region52: #{spiral_dnn_forward.1} parent=43 // pred_fallthru
        _
    $region44: #{spiral_dnn_forward.1} parent=5 // pred_fallthru
      _
    %p297 = scmp.le.s32.totalorder 1, %s16
    %p298 = scmp.lt.s32.totalorder %s16, 3
    %p299 = pnand %p297, %p298
    %p300 = pneg %p299
    // Predicated region
    $region53: #{spiral_dnn_forward.1} parent=5 // pred_check
      _
    $region54: #{spiral_dnn_forward.1} parent=5 // pred_check_branch
      %302 = sbr.rel (%p299) target = $region56
    $region55: #{spiral_dnn_forward.1} parent=5 // pred_region
      %s303 = ssub.s32 %s16, 1
      %s304 = smul.u32 4, %s21
      %p305 = scmp.lt.s32.totalorder %s304, 7
      %s306 = scalar_select %p305, %s304, 7
      %s307 = scalar_lea.vmem %s0, %s306
      %p308 = pneg %p42
      %p309 = pneg %p39
      %s310 = smul.u32 4, %s21
      %p311 = scmp.lt.s32.totalorder %s310, 7
      %s312 = scalar_select %p311, %s310, 7
      %s313 = scalar_lea.vmem %s1, %s312
      %p314 = pneg %p68
      %p315 = pneg %p65
      %p316 = pneg %p89
      %p317 = pneg %p86
      %p318 = pneg %p110
      %p319 = pneg %p107
      %p320 = pneg %p131
      %p321 = pneg %p128
      %p322 = pneg %p152
      %p323 = pneg %p149
      %p324 = pneg %p173
      %p325 = pneg %p170
      %p326 = pneg %p194
      %p327 = pneg %p191
      %p328 = pneg %p215
      %p329 = pneg %p212
      %p330 = pneg %p241
      %p331 = pneg %p238
      %s332 = smul.u32 4, %s21
      %p333 = scmp.lt.s32.totalorder %s332, 7
      %s334 = scalar_select %p333, %s332, 7
      %s335 = scalar_lea.vmem %s9, %s334
      %s336 = smul.u32 4, %s21
      %p337 = scmp.lt.s32.totalorder %s336, 7
      %s338 = scalar_select %p337, %s336, 7
      %s339 = scalar_lea.vmem %s0, %s338
      %s340 = smul.u32 4, %s21
      %s341 = smul.u32 4, %s21
      %p342 = scmp.lt.s32.totalorder %s341, 7
      %s343 = scalar_select %p342, %s341, 7
      %s344 = scalar_lea.vmem %s1, %s343
      %s345 = smul.u32 4, %s21
      %s346 = smul.u32 4, %s21
      %p347 = scmp.lt.s32.totalorder %s346, 7
      %s348 = scalar_select %p347, %s346, 7
      %s349 = scalar_lea.vmem %s9, %s348
      %s350 = smul.u32 4, %s21
      %v351 = vld [vmem:[%s2] sm:$0xff]
      %v352 = vld [vmem:[%s2 + $0x8] sm:$0xff]
      %v353 = vld [vmem:[%s2 + $0x10] sm:$0xff]
      %v354 = vld [vmem:[%s2 + $0x18] sm:$0xff]
      %v355 = vld [vmem:[%s339] sm:$0xf]
      %357 = vset.pattern.permute.xlu0 0
      %358 = vperm.xlu0 %357, %v351
      %v359 = vpop.permute.xlu0 %358
      %362 = vset.pattern.permute.xlu0 0
      %363 = vperm.xlu0 %362, %v352
      %v364 = vpop.permute.xlu0 %363
      %367 = vset.pattern.permute.xlu0 0
      %368 = vperm.xlu0 %367, %v353
      %v369 = vpop.permute.xlu0 %368
      %372 = vset.pattern.permute.xlu0 0
      %373 = vperm.xlu0 %372, %v354
      %v374 = vpop.permute.xlu0 %373
      %v377 = vlaneseq
      %v378 = vshrl.u32 %v377, 7
      %v379 = vsub.s32 0, %v378
      %v380 = vrot.slane %v355, %v379
      %v381 = vlaneseq
      %v382 = vshrl.u32 %v381, 7
      %v383 = vsub.s32 1, %v382
      %v384 = vrot.slane %v355, %v383
      %v385 = vlaneseq
      %v386 = vshrl.u32 %v385, 7
      %v387 = vsub.s32 2, %v386
      %v388 = vrot.slane %v355, %v387
      %v389 = vlaneseq
      %v390 = vshrl.u32 %v389, 7
      %v391 = vsub.s32 3, %v390
      %v392 = vrot.slane %v355, %v391
      %v397 = vmul.f32 %v359, %v380
      %v398 = vmul.f32 %v359, %v384
      %v399 = vmul.f32 %v359, %v388
      %v400 = vmul.f32 %v359, %v392
      %v401 = vmul.f32 %v364, %v380
      %v402 = vmul.f32 %v364, %v384
      %v403 = vmul.f32 %v364, %v388
      %v404 = vmul.f32 %v364, %v392
      %v405 = vmul.f32 %v369, %v380
      %v406 = vmul.f32 %v369, %v384
      %v407 = vmul.f32 %v369, %v388
      %v408 = vmul.f32 %v369, %v392
      %v409 = vmul.f32 %v374, %v380
      %v410 = vmul.f32 %v374, %v384
      %v411 = vmul.f32 %v374, %v388
      %v412 = vmul.f32 %v374, %v392
      %v413 = vld [vmem:[%s3] sm:$0xff]
      %v414 = vld [vmem:[%s3 + $0x8] sm:$0xff]
      %v415 = vld [vmem:[%s3 + $0x10] sm:$0xff]
      %v416 = vld [vmem:[%s3 + $0x18] sm:$0xff]
      %v417 = vld [vmem:[%s344] sm:$0xf]
      %419 = vset.pattern.permute.xlu0 0
      %420 = vperm.xlu0 %419, %v413
      %v421 = vpop.permute.xlu0 %420
      %424 = vset.pattern.permute.xlu0 0
      %425 = vperm.xlu0 %424, %v414
      %v426 = vpop.permute.xlu0 %425
      %429 = vset.pattern.permute.xlu0 0
      %430 = vperm.xlu0 %429, %v415
      %v431 = vpop.permute.xlu0 %430
      %434 = vset.pattern.permute.xlu0 0
      %435 = vperm.xlu0 %434, %v416
      %v436 = vpop.permute.xlu0 %435
      %v439 = vlaneseq
      %v440 = vshrl.u32 %v439, 7
      %v441 = vsub.s32 0, %v440
      %v442 = vrot.slane %v417, %v441
      %v443 = vlaneseq
      %v444 = vshrl.u32 %v443, 7
      %v445 = vsub.s32 1, %v444
      %v446 = vrot.slane %v417, %v445
      %v447 = vlaneseq
      %v448 = vshrl.u32 %v447, 7
      %v449 = vsub.s32 2, %v448
      %v450 = vrot.slane %v417, %v449
      %v451 = vlaneseq
      %v452 = vshrl.u32 %v451, 7
      %v453 = vsub.s32 3, %v452
      %v454 = vrot.slane %v417, %v453
      %v459 = vmul.f32 %v421, %v442
      %v460 = vmul.f32 %v421, %v446
      %v461 = vmul.f32 %v421, %v450
      %v462 = vmul.f32 %v421, %v454
      %v463 = vmul.f32 %v426, %v442
      %v464 = vmul.f32 %v426, %v446
      %v465 = vmul.f32 %v426, %v450
      %v466 = vmul.f32 %v426, %v454
      %v467 = vmul.f32 %v431, %v442
      %v468 = vmul.f32 %v431, %v446
      %v469 = vmul.f32 %v431, %v450
      %v470 = vmul.f32 %v431, %v454
      %v471 = vmul.f32 %v436, %v442
      %v472 = vmul.f32 %v436, %v446
      %v473 = vmul.f32 %v436, %v450
      %v474 = vmul.f32 %v436, %v454
      %v475 = vadd.f32 %v397, %v459
      %v476 = vadd.f32 %v398, %v460
      %v477 = vadd.f32 %v399, %v461
      %v478 = vadd.f32 %v400, %v462
      %v479 = vadd.f32 %v401, %v463
      %v480 = vadd.f32 %v402, %v464
      %v481 = vadd.f32 %v403, %v465
      %v482 = vadd.f32 %v404, %v466
      %v483 = vadd.f32 %v405, %v467
      %v484 = vadd.f32 %v406, %v468
      %v485 = vadd.f32 %v407, %v469
      %v486 = vadd.f32 %v408, %v470
      %v487 = vadd.f32 %v409, %v471
      %v488 = vadd.f32 %v410, %v472
      %v489 = vadd.f32 %v411, %v473
      %v490 = vadd.f32 %v412, %v474
      %v491 = vld [vmem:[%s4] sm:$0xff]
      %v492 = vld [vmem:[%s4 + $0x8] sm:$0xff]
      %v493 = vld [vmem:[%s4 + $0x10] sm:$0xff]
      %v494 = vld [vmem:[%s4 + $0x18] sm:$0xff]
      %496 = vset.pattern.permute.xlu0 0
      %497 = vperm.xlu0 %496, %v491
      %v498 = vpop.permute.xlu0 %497
      %501 = vset.pattern.permute.xlu0 0
      %502 = vperm.xlu0 %501, %v492
      %v503 = vpop.permute.xlu0 %502
      %506 = vset.pattern.permute.xlu0 0
      %507 = vperm.xlu0 %506, %v493
      %v508 = vpop.permute.xlu0 %507
      %511 = vset.pattern.permute.xlu0 0
      %512 = vperm.xlu0 %511, %v494
      %v513 = vpop.permute.xlu0 %512
      %v515 = vadd.f32 %v475, %v498
      %v516 = vadd.f32 %v476, %v498
      %v517 = vadd.f32 %v477, %v498
      %v518 = vadd.f32 %v478, %v498
      %v519 = vadd.f32 %v479, %v503
      %v520 = vadd.f32 %v480, %v503
      %v521 = vadd.f32 %v481, %v503
      %v522 = vadd.f32 %v482, %v503
      %v523 = vadd.f32 %v483, %v508
      %v524 = vadd.f32 %v484, %v508
      %v525 = vadd.f32 %v485, %v508
      %v526 = vadd.f32 %v486, %v508
      %v527 = vadd.f32 %v487, %v513
      %v528 = vadd.f32 %v488, %v513
      %v529 = vadd.f32 %v489, %v513
      %v530 = vadd.f32 %v490, %v513
      %v531 = vmax.f32 %v515, 0.0
      %v532 = vmax.f32 %v516, 0.0
      %v533 = vmax.f32 %v517, 0.0
      %v534 = vmax.f32 %v518, 0.0
      %v535 = vmax.f32 %v519, 0.0
      %v536 = vmax.f32 %v520, 0.0
      %v537 = vmax.f32 %v521, 0.0
      %v538 = vmax.f32 %v522, 0.0
      %v539 = vmax.f32 %v523, 0.0
      %v540 = vmax.f32 %v524, 0.0
      %v541 = vmax.f32 %v525, 0.0
      %v542 = vmax.f32 %v526, 0.0
      %v543 = vmax.f32 %v527, 0.0
      %v544 = vmax.f32 %v528, 0.0
      %v545 = vmax.f32 %v529, 0.0
      %v546 = vmax.f32 %v530, 0.0
      %v547 = vld [vmem:[%s5] sm:$0xff]
      %v548 = vld [vmem:[%s5 + $0x8] sm:$0xff]
      %v549 = vld [vmem:[%s5 + $0x10] sm:$0xff]
      %v550 = vld [vmem:[%s5 + $0x18] sm:$0xff]
      %v551 = vld [vmem:[%s6] sm:$0xff]
      %v552 = vld [vmem:[%s6 + $0x8] sm:$0xff]
      %v553 = vld [vmem:[%s6 + $0x10] sm:$0xff]
      %v554 = vld [vmem:[%s6 + $0x18] sm:$0xff]
      %556 = vset.pattern.permute.xlu0 0
      %557 = vperm.xlu0 %556, %v551
      %v558 = vpop.permute.xlu0 %557
      %561 = vset.pattern.permute.xlu0 0
      %562 = vperm.xlu0 %561, %v552
      %v563 = vpop.permute.xlu0 %562
      %566 = vset.pattern.permute.xlu0 0
      %567 = vperm.xlu0 %566, %v553
      %v568 = vpop.permute.xlu0 %567
      %571 = vset.pattern.permute.xlu0 0
      %572 = vperm.xlu0 %571, %v554
      %v573 = vpop.permute.xlu0 %572
      %vm575 = vcmask 261120
      %v577 = vsel %vm575, %v547, 0
      %v580 = vsel %vm575, %v548, 0
      %v583 = vsel %vm575, %v549, 0
      %v586 = vsel %vm575, %v550, 0
      %588 = vmatprep.subr.mxu0 %v532
      %589 = vmatpush1.msra.mxu0 %v531
      %590 = vmatprep.subr.mxu0 %v536
      %591 = vmatpush1.msra.mxu0 %v535
      %592 = vmatprep.subr.mxu0 %v540
      %593 = vmatpush1.msra.mxu0 %v539
      %594 = vmatprep.subr.mxu0 %v544
      %595 = vmatpush1.msra.mxu0 %v543
      %596 = vmatprep.subr.mxu0 0.0
      %597 = vmatpush1.msra.mxu0 0.0
      %598 = vmatprep.subr.mxu0 0.0
      %599 = vmatpush1.msra.mxu0 0.0
      %600 = vmatprep.subr.mxu0 0.0
      %601 = vmatpush1.msra.mxu0 0.0
      %602 = vmatprep.subr.mxu0 0.0
      %603 = vmatpush1.msra.mxu0 0.0
      %604 = vmatprep.subr.mxu0 0.0
      %605 = vmatpush1.msra.mxu0 0.0
      %606 = vmatprep.subr.mxu0 0.0
      %607 = vmatpush1.msra.mxu0 0.0
      %608 = vmatprep.subr.mxu0 0.0
      %609 = vmatpush1.msra.mxu0 0.0
      %610 = vmatprep.subr.mxu0 0.0
      %611 = vmatpush1.msra.mxu0 0.0
      %612 = vmatprep.subr.mxu0 0.0
      %613 = vmatpush1.msra.mxu0 0.0
      %614 = vmatprep.subr.mxu0 0.0
      %615 = vmatpush1.msra.mxu0 0.0
      %616 = vmatprep.subr.mxu0 0.0
      %617 = vmatpush1.msra.mxu0 0.0
      %618 = vmatprep.subr.mxu0 0.0
      %619 = vmatpush1.msra.mxu0 0.0
      %620 = vmatprep.subr.mxu0 0.0
      %621 = vmatpush1.msra.mxu0 0.0
      %622 = vmatprep.subr.mxu0 0.0
      %623 = vmatpush1.msra.mxu0 0.0
      %624 = vmatprep.subr.mxu0 0.0
      %625 = vmatpush1.msra.mxu0 0.0
      %626 = vmatprep.subr.mxu0 0.0
      %627 = vmatpush1.msra.mxu0 0.0
      %628 = vmatprep.subr.mxu0 0.0
      %629 = vmatpush1.msra.mxu0 0.0
      %630 = vmatprep.subr.mxu0 0.0
      %631 = vmatpush1.msra.mxu0 0.0
      %632 = vmatprep.subr.mxu0 0.0
      %633 = vmatpush1.msra.mxu0 0.0
      %634 = vmatprep.subr.mxu0 0.0
      %635 = vmatpush1.msra.mxu0 0.0
      %636 = vmatprep.subr.mxu0 0.0
      %637 = vmatpush1.msra.mxu0 0.0
      %638 = vmatprep.subr.mxu0 0.0
      %639 = vmatpush1.msra.mxu0 0.0
      %640 = vmatprep.subr.mxu0 0.0
      %641 = vmatpush1.msra.mxu0 0.0
      %642 = vmatprep.subr.mxu0 0.0
      %643 = vmatpush1.msra.mxu0 0.0
      %644 = vmatprep.subr.mxu0 0.0
      %645 = vmatpush1.msra.mxu0 0.0
      %646 = vmatprep.subr.mxu0 0.0
      %647 = vmatpush1.msra.mxu0 0.0
      %648 = vmatprep.subr.mxu0 0.0
      %649 = vmatpush1.msra.mxu0 0.0
      %650 = vmatprep.subr.mxu0 0.0
      %651 = vmatpush1.msra.mxu0 0.0
      %652 = vmatprep.mubr.f32.mxu0 0.0
      %653 = vmatmul.mubr.f32.gmra.mrb[0].mxu0 %v577
      %v654 = vpop.f32.mrb[0].mxu0
      %v655 = vadd.f32 %v558, %v654
      %v656 = vpop.f32.mrb[0].mxu0
      %v657 = vadd.f32 %v558, %v656
      %658 = vmatprep.mubr.f32.mxu0 0.0
      %659 = vmatmul.mubr.f32.gmra.mrb[0].mxu0 %v580
      %v660 = vpop.f32.mrb[0].mxu0
      %v661 = vadd.f32 %v563, %v660
      %v662 = vpop.f32.mrb[0].mxu0
      %v663 = vadd.f32 %v563, %v662
      %664 = vmatprep.mubr.f32.mxu0 0.0
      %665 = vmatmul.mubr.f32.gmra.mrb[0].mxu0 %v583
      %v666 = vpop.f32.mrb[0].mxu0
      %v667 = vadd.f32 %v568, %v666
      %v668 = vpop.f32.mrb[0].mxu0
      %v669 = vadd.f32 %v568, %v668
      %670 = vmatprep.mubr.f32.mxu0 0.0
      %671 = vmatmul.mubr.f32.gmra.mrb[0].mxu0 %v586
      %v672 = vpop.f32.mrb[0].mxu0
      %v673 = vadd.f32 %v573, %v672
      %v674 = vpop.f32.mrb[0].mxu0
      %v675 = vadd.f32 %v573, %v674
      %676 = vdwg.mxu0
      %677 = vmatprep.subr.mxu0 %v534
      %678 = vmatpush1.msra.mxu0 %v533
      %679 = vmatprep.subr.mxu0 %v538
      %680 = vmatpush1.msra.mxu0 %v537
      %681 = vmatprep.subr.mxu0 %v542
      %682 = vmatpush1.msra.mxu0 %v541
      %683 = vmatprep.subr.mxu0 %v546
      %684 = vmatpush1.msra.mxu0 %v545
      %685 = vmatprep.subr.mxu0 0.0
      %686 = vmatpush1.msra.mxu0 0.0
      %687 = vmatprep.subr.mxu0 0.0
      %688 = vmatpush1.msra.mxu0 0.0
      %689 = vmatprep.subr.mxu0 0.0
      %690 = vmatpush1.msra.mxu0 0.0
      %691 = vmatprep.subr.mxu0 0.0
      %692 = vmatpush1.msra.mxu0 0.0
      %693 = vmatprep.subr.mxu0 0.0
      %694 = vmatpush1.msra.mxu0 0.0
      %695 = vmatprep.subr.mxu0 0.0
      %696 = vmatpush1.msra.mxu0 0.0
      %697 = vmatprep.subr.mxu0 0.0
      %698 = vmatpush1.msra.mxu0 0.0
      %699 = vmatprep.subr.mxu0 0.0
      %700 = vmatpush1.msra.mxu0 0.0
      %701 = vmatprep.subr.mxu0 0.0
      %702 = vmatpush1.msra.mxu0 0.0
      %703 = vmatprep.subr.mxu0 0.0
      %704 = vmatpush1.msra.mxu0 0.0
      %705 = vmatprep.subr.mxu0 0.0
      %706 = vmatpush1.msra.mxu0 0.0
      %707 = vmatprep.subr.mxu0 0.0
      %708 = vmatpush1.msra.mxu0 0.0
      %709 = vmatprep.subr.mxu0 0.0
      %710 = vmatpush1.msra.mxu0 0.0
      %711 = vmatprep.subr.mxu0 0.0
      %712 = vmatpush1.msra.mxu0 0.0
      %713 = vmatprep.subr.mxu0 0.0
      %714 = vmatpush1.msra.mxu0 0.0
      %715 = vmatprep.subr.mxu0 0.0
      %716 = vmatpush1.msra.mxu0 0.0
      %717 = vmatprep.subr.mxu0 0.0
      %718 = vmatpush1.msra.mxu0 0.0
      %719 = vmatprep.subr.mxu0 0.0
      %720 = vmatpush1.msra.mxu0 0.0
      %721 = vmatprep.subr.mxu0 0.0
      %722 = vmatpush1.msra.mxu0 0.0
      %723 = vmatprep.subr.mxu0 0.0
      %724 = vmatpush1.msra.mxu0 0.0
      %725 = vmatprep.subr.mxu0 0.0
      %726 = vmatpush1.msra.mxu0 0.0
      %727 = vmatprep.subr.mxu0 0.0
      %728 = vmatpush1.msra.mxu0 0.0
      %729 = vmatprep.subr.mxu0 0.0
      %730 = vmatpush1.msra.mxu0 0.0
      %731 = vmatprep.subr.mxu0 0.0
      %732 = vmatpush1.msra.mxu0 0.0
      %733 = vmatprep.subr.mxu0 0.0
      %734 = vmatpush1.msra.mxu0 0.0
      %735 = vmatprep.subr.mxu0 0.0
      %736 = vmatpush1.msra.mxu0 0.0
      %737 = vmatprep.subr.mxu0 0.0
      %738 = vmatpush1.msra.mxu0 0.0
      %739 = vmatprep.subr.mxu0 0.0
      %740 = vmatpush1.msra.mxu0 0.0
      %741 = vmatprep.mubr.f32.mxu0 0.0
      %742 = vmatmul.mubr.f32.gmra.mrb[0].mxu0 %v577
      %v743 = vpop.f32.mrb[0].mxu0
      %v744 = vadd.f32 %v558, %v743
      %v745 = vpop.f32.mrb[0].mxu0
      %v746 = vadd.f32 %v558, %v745
      %747 = vmatprep.mubr.f32.mxu0 0.0
      %748 = vmatmul.mubr.f32.gmra.mrb[0].mxu0 %v580
      %v749 = vpop.f32.mrb[0].mxu0
      %v750 = vadd.f32 %v563, %v749
      %v751 = vpop.f32.mrb[0].mxu0
      %v752 = vadd.f32 %v563, %v751
      %753 = vmatprep.mubr.f32.mxu0 0.0
      %754 = vmatmul.mubr.f32.gmra.mrb[0].mxu0 %v583
      %v755 = vpop.f32.mrb[0].mxu0
      %v756 = vadd.f32 %v568, %v755
      %v757 = vpop.f32.mrb[0].mxu0
      %v758 = vadd.f32 %v568, %v757
      %759 = vmatprep.mubr.f32.mxu0 0.0
      %760 = vmatmul.mubr.f32.gmra.mrb[0].mxu0 %v586
      %v761 = vpop.f32.mrb[0].mxu0
      %v762 = vadd.f32 %v573, %v761
      %v763 = vpop.f32.mrb[0].mxu0
      %v764 = vadd.f32 %v573, %v763
      %765 = vdwg.mxu0
      %v766 = vmax.f32 %v655, 0.0
      %v767 = vmax.f32 %v657, 0.0
      %v768 = vmax.f32 %v744, 0.0
      %v769 = vmax.f32 %v746, 0.0
      %v770 = vmax.f32 %v661, 0.0
      %v771 = vmax.f32 %v663, 0.0
      %v772 = vmax.f32 %v750, 0.0
      %v773 = vmax.f32 %v752, 0.0
      %v774 = vmax.f32 %v667, 0.0
      %v775 = vmax.f32 %v669, 0.0
      %v776 = vmax.f32 %v756, 0.0
      %v777 = vmax.f32 %v758, 0.0
      %v778 = vmax.f32 %v673, 0.0
      %v779 = vmax.f32 %v675, 0.0
      %v780 = vmax.f32 %v762, 0.0
      %v781 = vmax.f32 %v764, 0.0
      %v782 = vld [vmem:[%s7] sm:$0xff]
      %v783 = vld [vmem:[%s7 + $0x8] sm:$0xff]
      %v784 = vld [vmem:[%s7 + $0x10] sm:$0xff]
      %v785 = vld [vmem:[%s7 + $0x18] sm:$0xff]
      %787 = vset.pattern.permute.xlu0 0
      %788 = vperm.xlu0 %787, %v782
      %v789 = vpop.permute.xlu0 %788
      %792 = vset.pattern.permute.xlu0 0
      %793 = vperm.xlu0 %792, %v783
      %v794 = vpop.permute.xlu0 %793
      %797 = vset.pattern.permute.xlu0 0
      %798 = vperm.xlu0 %797, %v784
      %v799 = vpop.permute.xlu0 %798
      %802 = vset.pattern.permute.xlu0 0
      %803 = vperm.xlu0 %802, %v785
      %v804 = vpop.permute.xlu0 %803
      %v806 = vmul.f32 %v789, %v766
      %v807 = vmul.f32 %v789, %v767
      %v808 = vmul.f32 %v789, %v768
      %v809 = vmul.f32 %v789, %v769
      %v810 = vmul.f32 %v794, %v770
      %v811 = vmul.f32 %v794, %v771
      %v812 = vmul.f32 %v794, %v772
      %v813 = vmul.f32 %v794, %v773
      %v814 = vmul.f32 %v799, %v774
      %v815 = vmul.f32 %v799, %v775
      %v816 = vmul.f32 %v799, %v776
      %v817 = vmul.f32 %v799, %v777
      %v818 = vmul.f32 %v804, %v778
      %v819 = vmul.f32 %v804, %v779
      %v820 = vmul.f32 %v804, %v780
      %v821 = vmul.f32 %v804, %v781
      %v822 = vadd.f32 %v806, %v810
      %v823 = vadd.f32 %v822, %v814
      %v824 = vadd.f32 %v823, %v818
      %v825 = vrot.slane %v824, 4
      %v826 = vadd.f32 %v824, %v825
      %v827 = vrot.slane %v826, 2
      %v828 = vadd.f32 %v826, %v827
      %v829 = vrot.slane %v828, 1
      %v830 = vadd.f32 %v828, %v829
      %v831 = vadd.f32 %v807, %v811
      %v832 = vadd.f32 %v831, %v815
      %v833 = vadd.f32 %v832, %v819
      %v834 = vrot.slane %v833, 4
      %v835 = vadd.f32 %v833, %v834
      %v836 = vrot.slane %v835, 2
      %v837 = vadd.f32 %v835, %v836
      %v838 = vrot.slane %v837, 1
      %v839 = vadd.f32 %v837, %v838
      %v840 = vadd.f32 %v808, %v812
      %v841 = vadd.f32 %v840, %v816
      %v842 = vadd.f32 %v841, %v820
      %v843 = vrot.slane %v842, 4
      %v844 = vadd.f32 %v842, %v843
      %v845 = vrot.slane %v844, 2
      %v846 = vadd.f32 %v844, %v845
      %v847 = vrot.slane %v846, 1
      %v848 = vadd.f32 %v846, %v847
      %v849 = vadd.f32 %v809, %v813
      %v850 = vadd.f32 %v849, %v817
      %v851 = vadd.f32 %v850, %v821
      %v852 = vrot.slane %v851, 4
      %v853 = vadd.f32 %v851, %v852
      %v854 = vrot.slane %v853, 2
      %v855 = vadd.f32 %v853, %v854
      %v856 = vrot.slane %v855, 1
      %v857 = vadd.f32 %v855, %v856
      %s858 = sld [smem:[#allocation2]]
      %v859 = vstv %s858
      %v860 = vadd.f32 %v830, %v859
      %v861 = vadd.f32 %v839, %v859
      %v862 = vadd.f32 %v848, %v859
      %v863 = vadd.f32 %v857, %v859
      %v864 = vxor.u32 %v860, 2147483648
      %v865 = vxor.u32 %v861, 2147483648
      %v866 = vxor.u32 %v862, 2147483648
      %v867 = vxor.u32 %v863, 2147483648
      %v868 = vmul.f32 %v864, 1.442695
      %v869 = vpow.pop %v868
      %v870 = vmul.f32 %v865, 1.442695
      %v871 = vpow.pop %v870
      %v872 = vmul.f32 %v866, 1.442695
      %v873 = vpow.pop %v872
      %v874 = vmul.f32 %v867, 1.442695
      %v875 = vpow.pop %v874
      %v876 = vadd.f32 %v869, 1.0
      %v877 = vadd.f32 %v871, 1.0
      %v878 = vadd.f32 %v873, 1.0
      %v879 = vadd.f32 %v875, 1.0
      %v880 = vrcp.pop %v876
      %v881 = vmul.f32 1.0, %v880
      %v882 = vrcp.pop %v877
      %v883 = vmul.f32 1.0, %v882
      %v884 = vrcp.pop %v878
      %v885 = vmul.f32 1.0, %v884
      %v886 = vrcp.pop %v879
      %v887 = vmul.f32 1.0, %v886
      %v892 = vcombine.low %v881, %v883
      %v893 = vcombine.low %v885, %v887
      %v895 = vunpack.c.l.s4 1966171168
      %v896 = vunpack.c.0.s8 %v895
      %v897 = vlaneseq
      %v898 = vshrl.u32 %v897, 7
      %v899 = vsub.s32 %v896, %v898
      %v900 = vrot.slane %v892, %v899
      %v902 = vunpack.c.l.s4 1966171168
      %v903 = vunpack.c.0.s8 %v902
      %v904 = vlaneseq
      %v905 = vshrl.u32 %v904, 7
      %v906 = vsub.s32 %v903, %v905
      %v907 = vrot.slane %v893, %v906
      %v908 = vcombine.low %v900, %v907
      %v910 = vunpack.c.l.s4 1966171168
      %v911 = vunpack.c.0.s8 %v910
      %v912 = vlaneseq
      %v913 = vshrl.u32 %v912, 7
      %v914 = vsub.s32 %v911, %v913
      %v915 = vrot.slane %v908, %v914
      %v917 = vlaneseq
      %vm918 = vcmp.ge.s32.totalorder %v917, 0
      %vm919 = vcmp.lt.s32.totalorder %v917, 512
      %vm920 = vmand %vm918, %vm919
      %921 = vst.msk [vmem:[%s349] sm:$0xf] %vm920, %v915
      %s922 = smul.u32 4, %s21
      %p923 = scmp.lt.s32.totalorder %s922, 7
      %s924 = scalar_select %p923, %s922, 7
      %s925 = scalar_lea.vmem %s9, %s924
      // Predicated region
      $region57: #{spiral_dnn_forward.1} parent=55 // pred_check
        %p926 = pneg %p238
      $region58: #{spiral_dnn_forward.1} parent=55 // pred_check_branch
        %928 = sbr.rel (%p926) target = $region60
      $region59: #{spiral_dnn_forward.1} parent=55 // pred_region
        %s929 = smul.u32 4, %s21
      $region60: #{spiral_dnn_forward.1} parent=55 // pred_fallthru
        _
    $region56: #{spiral_dnn_forward.1} parent=5 // pred_fallthru
      _
    %p930 = scmp.le.s32.totalorder 2, %s16
    // Predicated region
    $region61: #{spiral_dnn_forward.1} parent=5 // pred_check
      %p931 = pneg %p930
    $region62: #{spiral_dnn_forward.1} parent=5 // pred_check_branch
      %933 = sbr.rel (%p931) target = $region64
    $region63: #{spiral_dnn_forward.1} parent=5 // pred_region
      %s934 = ssub.s32 %s16, 2
      // Predicated region
      $region65: #{spiral_dnn_forward.1} parent=63 // pred_check
        %p935 = pneg %p244
      $region66: #{spiral_dnn_forward.1} parent=63 // pred_check_branch
        %937 = sbr.rel (%p935) target = $region68
      $region67: #{spiral_dnn_forward.1} parent=63 // pred_region
        %s938 = smul.u32 4, %s22
        %p939 = scmp.lt.s32.totalorder %s938, 7
        %s940 = scalar_select %p939, %s938, 7
        %s941 = scalar_lea.vmem %s9, %s940
      $region68: #{spiral_dnn_forward.1} parent=63 // pred_fallthru
        _
    $region64: #{spiral_dnn_forward.1} parent=5 // pred_fallthru
      _
  $region6: #{spiral_dnn_forward.1} parent=0 // loop_footer
    %s20 = sadd.s32 1, %s16
  $region7: #{spiral_dnn_forward.1} parent=0 // loop_footer_branch
    %15 = sbr.rel target = $region3
  $region8: #{spiral_dnn_forward.1} parent=0 // loop_exit
    _

</llo_original>
